<compile_context>
chip_gen: v7x
topology: tpu7x:2x2x1
jax: 0.10.0
libtpu: 0.0.40
codegen_flags: <defaults>
</compile_context>

<pallas_src>
import numpy as np
import jax
import jax.numpy as jnp
from jax.experimental import pallas as pl
from jax.experimental.pallas import tpu as pltpu


def _round_up(x, m):
    return ((x + m - 1) // m) * m


# ----------------------------------------------------------------------------
# Geometry setup (deterministic, synthetic) -- replaces g.pm / SetGeometry
# ----------------------------------------------------------------------------
def build_projection_matrices(n_angles, U, V, f=30.0, dso=40.0):
    """Synthetic cone-beam 3x4 projection matrices, shape (A, 3, 4)."""
    cu, cv = (U - 1) / 2.0, (V - 1) / 2.0
    K = np.array([[f, 0.0, cu],
                  [0.0, f, cv],
                  [0.0, 0.0, 1.0]], dtype=np.float64)
    pms = []
    for a in range(n_angles):
        th = 2.0 * np.pi * a / n_angles
        d = np.array([np.cos(th), np.sin(th), 0.0])          # source direction
        s = dso * d                                           # source position
        x_cam = np.array([-np.sin(th), np.cos(th), 0.0])
        y_cam = np.array([0.0, 0.0, 1.0])
        z_cam = -d                                            # toward origin
        M = np.stack([x_cam, y_cam, z_cam], axis=0)           # (3, 3)
        Rt = np.concatenate([M, (-M @ s)[:, None]], axis=1)   # (3, 4)
        pms.append(K @ Rt)
    return np.stack(pms, axis=0).astype(np.float32)           # (A, 3, 4)


def build_system_matrix(pm_stack, vol_shape, U, V):
    """Dense per-angle projector S with bilinear splatting.

    Returns S of shape (A, V*U, X*Y*Z) so that proj_flat[a] = S[a] @ vol_flat.
    (Stands in for CudaTools ProjectorSFForward as an explicit linear op.)
    """
    # TODO(synk): dense S is only viable at toy sizes; real CT geometries need a
    # sparse/footprint (gather) formulation built directly in the packed layout.
    X, Y, Z = vol_shape
    xs = np.arange(X) - (X - 1) / 2.0
    ys = np.arange(Y) - (Y - 1) / 2.0
    zs = np.arange(Z) - (Z - 1) / 2.0
    grid = np.stack(np.meshgrid(xs, ys, zs, indexing="ij"), axis=-1).reshape(-1, 3)
    hom = np.concatenate([grid, np.ones((grid.shape[0], 1))], axis=1)  # (VOX, 4)
    n_ang = pm_stack.shape[0]
    vox = X * Y * Z
    S = np.zeros((n_ang, V * U, vox), dtype=np.float32)
    j_idx = np.arange(vox)
    for a in range(n_ang):
        p = hom @ pm_stack[a].astype(np.float64).T            # (VOX, 3)
        u = p[:, 0] / p[:, 2]
        v = p[:, 1] / p[:, 2]
        u0 = np.floor(u).astype(np.int64)
        v0 = np.floor(v).astype(np.int64)
        du, dv = u - u0, v - v0
        corners = [(u0, v0, (1 - du) * (1 - dv)),
                   (u0 + 1, v0, du * (1 - dv)),
                   (u0, v0 + 1, (1 - du) * dv),
                   (u0 + 1, v0 + 1, du * dv)]
        for uu, vv, w in corners:
            valid = (uu >= 0) & (uu < U) & (vv >= 0) & (vv < V)
            det_idx = vv[valid] * U + uu[valid]
            np.add.at(S[a], (det_idx, j_idx[valid]), w[valid].astype(np.float32))
    return S


# ----------------------------------------------------------------------------
# Repack S into block-compacted, bf16, lane-dense layout for the kernel
# ----------------------------------------------------------------------------
def pack_system_matrix(S, det_shape, tk=128, tn=512):
    """Repack dense S (A, V*U, VOX) into (nt, max_nnz, TK, TN) bf16 tiles.

    Only K-tiles containing nonzeros are kept per N-tile; `kidx` maps each
    kept slot back to its original K-tile (for indexing the volume).  Padded
    slots are zero blocks (kidx=0) and contribute nothing.
    """
    A, VU, VOX = S.shape
    V, U = det_shape
    assert VU == V * U

    uv_pad = _round_up(VU, 128)                    # lane-dense detector axis
    TK = min(tk, _round_up(VOX, 128))
    TN = min(tn, _round_up(A * uv_pad, 128))

    N = A * uv_pad
    N_pad = _round_up(N, TN)
    VOX_pad = _round_up(VOX, TK)

    # (A, VU, VOX) -> padded transposed 2-D operator (VOX_pad, N_pad)
    S_det = np.zeros((A, uv_pad, VOX), dtype=np.float32)
    S_det[:, :VU, :] = S
    St2d = np.ascontiguousarray(S_det.transpose(2, 0, 1).reshape(VOX, N))
    St2d = np.pad(St2d, ((0, VOX_pad - VOX), (0, N_pad - N)))

    kt, nt = VOX_pad // TK, N_pad // TN
    tiles = St2d.reshape(kt, TK, nt, TN)
    nz = np.abs(tiles).sum(axis=(1, 3)) > 0.0      # (kt, nt) tile occupancy
    max_nnz = max(1, int(nz.sum(axis=0).max()))

    St_compact = np.zeros((nt, max_nnz, TK, TN), dtype=np.float32)
    kidx = np.zeros((nt, max_nnz), dtype=np.int32)
    for j in range(nt):
        ks = np.nonzero(nz[:, j])[0]
        for s, kk in enumerate(ks):
            St_compact[j, s] = tiles[kk, :, j, :]
            kidx[j, s] = int(kk)

    meta = dict(A=A, V=V, U=U, VU=VU, uv_pad=uv_pad, VOX=VOX, VOX_pad=VOX_pad,
                TK=TK, TN=TN, nt=nt, kt=kt, max_nnz=max_nnz, N=N, N_pad=N_pad)
    return (jnp.asarray(St_compact, dtype=jnp.bfloat16),
            jnp.asarray(kidx),
            meta)


# ----------------------------------------------------------------------------
# Pallas kernel: tiled, block-sparse forward projection with f32 accumulator
# ----------------------------------------------------------------------------
def _fwd_proj_kernel(kidx_ref, vol_ref, st_ref, o_ref, acc_ref):
    # vol_ref: (1, TK) bf16 ; st_ref: (TK, TN) bf16 ; o_ref: (1, TN) f32
    # kidx_ref is only consumed by the index_maps (scalar prefetch).
    del kidx_ref
    k = pl.program_id(1)

    @pl.when(k == 0)
    def _init():
        acc_ref[...] = jnp.zeros_like(acc_ref)

    acc_ref[...] += jnp.dot(vol_ref[...], st_ref[...],
                            preferred_element_type=jnp.float32)

    @pl.when(k == pl.num_programs(1) - 1)
    def _store():
        o_ref[...] = acc_ref[...].astype(o_ref.dtype)


def fwd_project(vol, St_compact, kidx, meta):
    """proj[a] = reshape(S[a] @ vol_flat, (V, U)) for all angles, via Pallas."""
    A, V, U = meta["A"], meta["V"], meta["U"]
    TK, TN = meta["TK"], meta["TN"]
    nt, max_nnz = meta["nt"], meta["max_nnz"]
    VOX, VOX_pad = meta["VOX"], meta["VOX_pad"]
    uv_pad, N_pad = meta["uv_pad"], meta["N_pad"]

    vol_flat = vol.reshape(-1).astype(jnp.bfloat16)
    vol_row = jnp.zeros((1, VOX_pad), dtype=jnp.bfloat16).at[0, :VOX].set(vol_flat)

    out = pl.pallas_call(
        _fwd_proj_kernel,
        out_shape=jax.ShapeDtypeStruct((1, N_pad), jnp.float32),
        grid_spec=pltpu.PrefetchScalarGridSpec(
            num_scalar_prefetch=1,
            grid=(nt, max_nnz),                      # reduction (K) axis last
            in_specs=[
                # volume K-slice picked through the scalar-prefetched tile index
                pl.BlockSpec((1, TK), lambda j, k, kidx: (0, kidx[j, k])),
                # compacted (nonzero-only) S^T tile for this (n-tile, slot)
                pl.BlockSpec((None, None, TK, TN),
                             lambda j, k, kidx: (j, k, 0, 0)),
            ],
            out_specs=pl.BlockSpec((1, TN), lambda j, k, kidx: (0, j)),
            scratch_shapes=[pltpu.VMEM((1, TN), jnp.float32)],
        ),
        compiler_params=pltpu.CompilerParams(
            dimension_semantics=("parallel", "arbitrary"),
            vmem_limit_bytes=32 * 1024 * 1024,       # raise v5e's 16 MiB default
        ),
    )(kidx, vol_row, St_compact)

    proj = out[0, :A * uv_pad].reshape(A, uv_pad)[:, :V * U]
    return proj.reshape(A, V, U)


class TorchCTPallas:
    """JAX/Pallas analogue of torchCT (forward projection path)."""

    def __init__(self, n_angles, vol_shape, det_shape, tk=128, tn=512):
        self.vol_shape = vol_shape               # prec.XYZdim
        self.det_shape = det_shape               # UVdim[-1::-1] = (V, U)
        V, U = det_shape
        self.pm = build_projection_matrices(n_angles, U, V)            # g.pm (A,3,4)
        self.S_dense = build_system_matrix(self.pm, vol_shape, U, V)   # f32 reference op
        self.St_compact, self.kidx, self.meta = pack_system_matrix(
            self.S_dense, det_shape, tk=tk, tn=tn)

    def fwdProject(self, vol):
        return fwd_project(vol, self.St_compact, self.kidx, self.meta)

    def forward(self, vol):
        # torchCT.forward calls fwdProject (reference code discards the result);
        # we return it so callers can use it.
        return self.fwdProject(vol)

    # TODO(synk): backProject / PA / motion variants need the adjoint operator +
    # per-angle geometry swaps; only the forward-projection hot path is here.


if __name__ == "__main__":
    # Small, forward-consistent shapes: 8x8x8 volume, 16x16 detector, 8 angles.
    X = Y = Z = 8
    U = V = 16
    A = 8

    tct = TorchCTPallas(n_angles=A, vol_shape=(X, Y, Z), det_shape=(V, U))

    key = jax.random.PRNGKey(0)
    vol = jax.random.normal(key, (X, Y, Z), dtype=jnp.float32)

    proj = tct.forward(vol)
    proj = jax.block_until_ready(proj)
    assert proj.shape == (A, V, U)
    proj_np = np.asarray(proj)

    # Tight check: same linear operator evaluated with the same bf16-quantized
    # operands (kernel does bf16 x bf16 multiplies with f32 accumulation).
    S2 = tct.S_dense.reshape(A * V * U, X * Y * Z)
    Sq = np.asarray(jnp.asarray(S2, dtype=jnp.bfloat16), dtype=np.float32)
    vq = np.asarray(jnp.asarray(vol.reshape(-1), dtype=jnp.bfloat16),
                    dtype=np.float32)
    ref_q = (Sq @ vq).reshape(A, V, U)
    np.testing.assert_allclose(proj_np, ref_q, rtol=2e-3, atol=2e-3)

    # Loose check vs the full-f32 operator (bf16 quantization tolerance only).
    ref_f = (S2 @ np.asarray(vol).reshape(-1)).reshape(A, V, U)
    scale = float(np.abs(ref_f).max()) + 1.0
    np.testing.assert_allclose(proj_np, ref_f, rtol=5e-2, atol=5e-2 * scale)

    print("KERNEL_OK")
</pallas_src>

<mosaic_0001>
module attributes {stable_mosaic.version = 11 : i64} {
  func.func @_fwd_proj_kernel(%arg0: i32, %arg1: i32, %arg2: memref<4x4xi32, #tpu.memory_space<smem>>, %arg3: memref<1x128xbf16, #tpu.memory_space<vmem>>, %arg4: memref<1x1x128x512xbf16, #tpu.memory_space<vmem>>, %arg5: memref<1x512xf32, #tpu.memory_space<vmem>>, %arg6: memref<1x512xf32, #tpu.memory_space<vmem>>) attributes {dimension_semantics = [#tpu.dimension_semantics<parallel>, #tpu.dimension_semantics<arbitrary>], iteration_bounds = array<i64: 4, 4>, scalar_prefetch = 1 : i64, scratch_operands = 1 : i64, tpu.core_type = #tpu.core_type<tc>, window_params = [{transform_indices = @transform_0, window_bounds = array<i64: 1, 128>}, {transform_indices = @transform_1, window_bounds = array<i64: 1, 1, 128, 512>}, {transform_indices = @transform_2, window_bounds = array<i64: 1, 512>}]} {
    %c0_i32 = arith.constant 0 : i32
    %0 = arith.cmpi eq, %arg1, %c0_i32 : i32
    %1 = arith.extui %0 : i1 to i32
    %c0_i32_0 = arith.constant 0 : i32
    %2 = arith.cmpi ne, %1, %c0_i32_0 : i32
    scf.if %2 {
      %cst_11 = arith.constant 0.000000e+00 : f32
      %13 = vector.broadcast %cst_11 : f32 to vector<1x512xf32>
      %c0_12 = arith.constant 0 : index
      %c0_13 = arith.constant 0 : index
      %14 = vector.load %arg6[%c0_12, %c0_13] : memref<1x512xf32, #tpu.memory_space<vmem>>, vector<1x512xf32>
      tpu.vector_store %arg6[%c0_12, %c0_13], %13 {strides = array<i32>} : memref<1x512xf32, #tpu.memory_space<vmem>>, vector<1x512xf32>,
    } else {
    }
    %c0 = arith.constant 0 : index
    %c0_1 = arith.constant 0 : index
    %3 = vector.load %arg6[%c0, %c0_1] : memref<1x512xf32, #tpu.memory_space<vmem>>, vector<1x512xf32>
    %c0_2 = arith.constant 0 : index
    %c0_3 = arith.constant 0 : index
    %4 = vector.load %arg3[%c0_2, %c0_3] : memref<1x128xbf16, #tpu.memory_space<vmem>>, vector<1x128xbf16>
    %c0_4 = arith.constant 0 : index
    %c0_5 = arith.constant 0 : index
    %c0_6 = arith.constant 0 : index
    %c0_7 = arith.constant 0 : index
    %5 = vector.load %arg4[%c0_4, %c0_5, %c0_6, %c0_7] : memref<1x1x128x512xbf16, #tpu.memory_space<vmem>>, vector<1x1x128x512xbf16>
    %6 = vector.shape_cast %5 : vector<1x1x128x512xbf16> to vector<128x512xbf16>
    %cst = arith.constant dense<0.000000e+00> : vector<1x512xf32>
    %7 = tpu.matmul %4, %6, %cst {dimension_numbers = #tpu.dot_dimension_numbers<[1], [0], [0], [1], [0, 0, 1, 1], [], []>} : vector<1x128xbf16>, vector<128x512xbf16>, vector<1x512xf32> -> vector<1x512xf32>
    %8 = arith.addf %3, %7 : vector<1x512xf32>
    %c0_8 = arith.constant 0 : index
    %c0_9 = arith.constant 0 : index
    %9 = vector.load %arg6[%c0_8, %c0_9] : memref<1x512xf32, #tpu.memory_space<vmem>>, vector<1x512xf32>
    tpu.vector_store %arg6[%c0_8, %c0_9], %8 {strides = array<i32>} : memref<1x512xf32, #tpu.memory_space<vmem>>, vector<1x512xf32>,
    %c3_i32 = arith.constant 3 : i32
    %10 = arith.cmpi eq, %arg1, %c3_i32 : i32
    %11 = arith.extui %10 : i1 to i32
    %c0_i32_10 = arith.constant 0 : i32
    %12 = arith.cmpi ne, %11, %c0_i32_10 : i32
    scf.if %12 {
      %c0_11 = arith.constant 0 : index
      %c0_12 = arith.constant 0 : index
      %13 = vector.load %arg6[%c0_11, %c0_12] : memref<1x512xf32, #tpu.memory_space<vmem>>, vector<1x512xf32>
      %c0_13 = arith.constant 0 : index
      %c0_14 = arith.constant 0 : index
      %14 = vector.load %arg5[%c0_13, %c0_14] : memref<1x512xf32, #tpu.memory_space<vmem>>, vector<1x512xf32>
      tpu.vector_store %arg5[%c0_13, %c0_14], %13 {strides = array<i32>} : memref<1x512xf32, #tpu.memory_space<vmem>>, vector<1x512xf32>,
    } else {
    }
    return
  }
  func.func @transform_0(%arg0: i32, %arg1: i32, %arg2: memref<4x4xi32, #tpu.memory_space<smem>>) -> (i32, i32) {
    %0 = arith.index_cast %arg0 : i32 to index
    %1 = arith.index_cast %arg1 : i32 to index
    %2 = memref.load %arg2[%0, %1] : memref<4x4xi32, #tpu.memory_space<smem>>
    %c0_i32 = arith.constant 0 : i32
    %c0_i32_0 = arith.constant 0 : i32
    return %c0_i32, %2 : i32, i32
  }
  func.func @transform_1(%arg0: i32, %arg1: i32, %arg2: memref<4x4xi32, #tpu.memory_space<smem>>) -> (i32, i32, i32, i32) {
    %c0_i32 = arith.constant 0 : i32
    %c0_i32_0 = arith.constant 0 : i32
    %c0_i32_1 = arith.constant 0 : i32
    return %arg0, %arg1, %c0_i32, %c0_i32_0 : i32, i32, i32, i32
  }
  func.func @transform_2(%arg0: i32, %arg1: i32, %arg2: memref<4x4xi32, #tpu.memory_space<smem>>) -> (i32, i32) {
    %c0_i32 = arith.constant 0 : i32
    %c0_i32_0 = arith.constant 0 : i32
    return %c0_i32, %arg0 : i32, i32
  }
}

</mosaic_0001>

<llo_original>
// kernel: tpu_custom_call.1
$region0: #{tpu_custom_call.1}
  #allocation0 [shape = 'u32[]', space=smem, size = 0x4, offset = 0x4, fixed_abs, tag = 'smem constant byte address 0x4 - core index']
  #allocation1 [shape = 'u32[144,128]{1,0:T(1,128)}', space=vmem, size = 0x12000, scoped, tag = 'internal scratch']
  #allocation2 [shape = 'f32[1,512]{1,0:T(1,128)}', space=vmem, size = 0x800, scoped, tag = 'scratch operand']
  #allocation3 [shape = 's32[1]{0}', space=sflag, size = 0x4, scoped, tag = 'scoped memory for tpu_custom_call.1']
  #allocation4 [shape = 'u8[2048]{0}', space=smem, size = 0x800, scoped, tag = 'prefetched SMEM operand 0']
  %s0 = inlined_call_operand.hbm [shape: s32[4,4], index: 0, kind: input, shape index: {}]
  %s1 = inlined_call_operand.hbm [shape: bf16[1,512], index: 1, kind: input, shape index: {}]
  %s2 = inlined_call_operand.hbm [shape: bf16[4,4,128,512], index: 2, kind: input, shape index: {}]
  %s3 = inlined_call_operand.hbm [shape: f32[1,2048], index: 3, kind: output, shape index: {}]
  %s4 = sld [smem:[#allocation0]]
  $region57: #{tpu_custom_call.1} parent=0
    _
  %s6 = ssub.s32 1, %s4
  %s7 = scalar_select 0, %s6, %s4
  %9 = dma.hbm_to_smem %s0, 64, [#allocation4], [#allocation3]
  %10 = dma.done [#allocation3], 64
  %11 = sfence
  $region1: #{tpu_custom_call.1} parent=0
    #allocation5 [shape = 'u8[1024]{0}', space=vmem, size = 0x400, scoped, tag = 'input window, operand 1']
    #allocation6 [shape = 's32[2]{0}', space=sflag, size = 0x8, scoped, tag = 'scoped memory for tpu_custom_call.1']
    #allocation7 [shape = 's32[2]{0}', space=sflag, size = 0x8, scoped, tag = 'scoped memory for tpu_custom_call.1']
    #allocation8 [shape = 'u8[262144]{0}', space=vmem, size = 0x40000, scoped, tag = 'input window, operand 2']
    #allocation9 [shape = 's32[2]{0}', space=sflag, size = 0x8, scoped, tag = 'scoped memory for tpu_custom_call.1']
    #allocation10 [shape = 'u8[4096]{0}', space=vmem, size = 0x1000, scoped, tag = 'output window, operand 0']
    %12 = vsyncpa [#allocation6], 0
    %s13 = scalar_lea.sflag [#allocation6], 1
    %14 = vsyncpa %s13, 0
    %15 = vsyncpa [#allocation9], 0
    %s16 = scalar_lea.sflag [#allocation9], 1
    %17 = vsyncpa %s16, 0
    %18 = vsyncpa [#allocation7], 0
    %s19 = scalar_lea.sflag [#allocation7], 1
    %20 = vsyncpa %s19, 0
    loop: start=0, step=1, limit=18
    $region2: #{tpu_custom_call.1} parent=1 // loop_pre_header
      _
    $region3: #{tpu_custom_call.1} parent=1 // loop_header
      %s22 = sphi 0, %s26
      %p23 = scmp.ge.s32.totalorder %s22, 18
      %s29 = sphi 0, %s41
      %s30 = sphi 0, %s37
      %s31 = sphi 0, %s29
      %s32 = sphi 0, %s30
      %s33 = sphi 0, %s31
      %s34 = sphi 0, %s32
      %s60 = sphi 0, %s62
      %s63 = sphi 0, %s60
      %s64 = sphi 0, %s63
      %s80 = sphi 0, %s64
      %s88 = sphi 0, %s90
      %s91 = sphi 0, %s88
      %s92 = sphi 0, %s91
      %s108 = sphi 0, %s92
      %s114 = sphi 0, %s116
      %s117 = sphi 0, %s114
      %s118 = sphi 0, %s117
      %s134 = sphi 0, %s118
    $region4: #{tpu_custom_call.1} parent=1 // loop_header_branch
      %25 = sbr.rel (%p23) target = $region8
    $region5: #{tpu_custom_call.1} parent=1 // loop_body
      %s27 = ssub.s32 %s22, 1
      %s28 = ssub.s32 %s22, 2
      %s35 = sadd.s32 1, %s30
      %p36 = scmp.ge.s32.totalorder %s35, 4
      %s37 = scalar_select %p36, 0, %s35
      %s38 = sadd.s32 1, %s29
      %s39 = scalar_select %p36, %s38, %s29
      %p40 = scmp.ge.s32.totalorder %s39, 4
      %s41 = scalar_select %p40, 0, %s39
      %s42 = sshra.s32 %s30, 7
      %s43 = sand.u32 %s30, 127
      %s44 = sadd.s32 %s42, %s29
      %s45 = smul.u32 %s44, 128
      %s46 = sshra.s32 %s30, 7
      %s47 = sand.u32 %s30, 127
      %s48 = sadd.s32 %s45, %s47
      %s49 = sld [smem:[#allocation4 + %s48]]
      %s50 = sshra.s32 %s37, 7
      %s51 = sand.u32 %s37, 127
      %s52 = sadd.s32 %s50, %s41
      %s53 = smul.u32 %s52, 128
      %s54 = sshra.s32 %s37, 7
      %s55 = sand.u32 %s37, 127
      %s56 = sadd.s32 %s53, %s55
      %s57 = sld [smem:[#allocation4 + %s56]]
      %s58 = ssub.s32 %s49, %s57
      %p59 = scmp.eq.s32.totalorder %s58, 0
      %s61 = sadd.s32 %s60, 1
      %s62 = scalar_select %p59, %s60, %s61
      %p65 = pneg %p59
      %p66 = scmp.eq.s32.totalorder %s22, 15
      %p67 = por %p65, %p66
      %p68 = scmp.ne.s32.totalorder %s60, %s63
      %p69 = scmp.eq.s32.totalorder %s22, 0
      %p70 = por %p68, %p69
      %p71 = scmp.ne.s32.totalorder %s60, %s63
      %p72 = scmp.eq.s32.totalorder %s27, 15
      %p73 = por %p71, %p72
      %p74 = scmp.ne.s32.totalorder %s63, %s64
      %p75 = scmp.eq.s32.totalorder %s27, 0
      %p76 = por %p74, %p75
      %p77 = scmp.ne.s32.totalorder %s63, %s64
      %p78 = scmp.eq.s32.totalorder %s28, 15
      %p79 = por %p77, %p78
      %p81 = scmp.ne.s32.totalorder %s64, %s80
      %p82 = scmp.eq.s32.totalorder %s28, 0
      %p83 = por %p81, %p82
      %s84 = ssub.s32 %s29, %s41
      %s85 = ssub.s32 %s30, %s37
      %s86 = sor.u32 %s84, %s85
      %p87 = scmp.eq.s32.totalorder %s86, 0
      %s89 = sadd.s32 %s88, 1
      %s90 = scalar_select %p87, %s88, %s89
      %p93 = pneg %p87
      %p94 = scmp.eq.s32.totalorder %s22, 15
      %p95 = por %p93, %p94
      %p96 = scmp.ne.s32.totalorder %s88, %s91
      %p97 = scmp.eq.s32.totalorder %s22, 0
      %p98 = por %p96, %p97
      %p99 = scmp.ne.s32.totalorder %s88, %s91
      %p100 = scmp.eq.s32.totalorder %s27, 15
      %p101 = por %p99, %p100
      %p102 = scmp.ne.s32.totalorder %s91, %s92
      %p103 = scmp.eq.s32.totalorder %s27, 0
      %p104 = por %p102, %p103
      %p105 = scmp.ne.s32.totalorder %s91, %s92
      %p106 = scmp.eq.s32.totalorder %s28, 15
      %p107 = por %p105, %p106
      %p109 = scmp.ne.s32.totalorder %s92, %s108
      %p110 = scmp.eq.s32.totalorder %s28, 0
      %p111 = por %p109, %p110
      %s112 = ssub.s32 %s29, %s41
      %p113 = scmp.eq.s32.totalorder %s112, 0
      %s115 = sadd.s32 %s114, 1
      %s116 = scalar_select %p113, %s114, %s115
      %p119 = pneg %p113
      %p120 = scmp.eq.s32.totalorder %s22, 15
      %p121 = por %p119, %p120
      %p122 = scmp.ne.s32.totalorder %s114, %s117
      %p123 = scmp.eq.s32.totalorder %s22, 0
      %p124 = por %p122, %p123
      %p125 = scmp.ne.s32.totalorder %s114, %s117
      %p126 = scmp.eq.s32.totalorder %s27, 15
      %p127 = por %p125, %p126
      %p128 = scmp.ne.s32.totalorder %s117, %s118
      %p129 = scmp.eq.s32.totalorder %s27, 0
      %p130 = por %p128, %p129
      %p131 = scmp.ne.s32.totalorder %s117, %s118
      %p132 = scmp.eq.s32.totalorder %s28, 15
      %p133 = por %p131, %p132
      %p135 = scmp.ne.s32.totalorder %s118, %s134
      %p136 = scmp.eq.s32.totalorder %s28, 0
      %p137 = por %p135, %p136
      %p138 = scmp.le.s32.totalorder 1, %s22
      %p139 = scmp.lt.s32.totalorder %s22, 17
      %p140 = pnand %p138, %p139
      %p141 = pneg %p140
      // Predicated region
      $region9: #{tpu_custom_call.1} parent=5 // pred_check
        _
      $region10: #{tpu_custom_call.1} parent=5 // pred_check_branch
        %143 = sbr.rel (%p140) target = $region12
      $region11: #{tpu_custom_call.1} parent=5 // pred_region
        %s144 = ssub.s32 %s22, 1
      $region12: #{tpu_custom_call.1} parent=5 // pred_fallthru
        _
      %p145 = scmp.lt.s32.totalorder %s22, 16
      // Predicated region
      $region13: #{tpu_custom_call.1} parent=5 // pred_check
        %p146 = pneg %p145
      $region14: #{tpu_custom_call.1} parent=5 // pred_check_branch
        %148 = sbr.rel (%p146) target = $region16
      $region15: #{tpu_custom_call.1} parent=5 // pred_region
        // Predicated region
        $region17: #{tpu_custom_call.1} parent=15 // pred_check
          %p149 = pneg %p70
        $region18: #{tpu_custom_call.1} parent=15 // pred_check_branch
          %151 = sbr.rel (%p149) target = $region20
        $region19: #{tpu_custom_call.1} parent=15 // pred_region
          %s152 = sand.u32 %s60, 1
          %s153 = scalar_lea.sflag [#allocation6], %s152
          %s154 = sand.u32 %s60, 1
          %s155 = scalar_lea.vmem [#allocation5], %s154
          %s156 = sshra.s32 %s30, 7
          %s157 = sand.u32 %s30, 127
          %s158 = sadd.s32 %s156, %s29
          %s159 = smul.u32 %s158, 128
          %s160 = sshra.s32 %s30, 7
          %s161 = sand.u32 %s30, 127
          %s162 = sadd.s32 %s159, %s161
          %s163 = sld [smem:[#allocation4 + %s162]]
          %s165 = ssub.s32 16, 16
          %166 = vsyncadd %s153, %s165
          %s167 = smul.addr %s163, 16
          %s168 = scalar_lea.hbm %s1, %s167
          %s170 = sshll.u32 %s155, 4
          %s171 = int_to_ptr.vmem [resolvable:$true] %s170
          %173 = dma.hbm_to_vmem [thread:$0]  %s168, 16, %s171, %s153
        $region20: #{tpu_custom_call.1} parent=15 // pred_fallthru
          _
        // Predicated region
        $region21: #{tpu_custom_call.1} parent=15 // pred_check
          %p174 = pneg %p98
        $region22: #{tpu_custom_call.1} parent=15 // pred_check_branch
          %176 = sbr.rel (%p174) target = $region24
        $region23: #{tpu_custom_call.1} parent=15 // pred_region
          %s177 = sand.u32 %s88, 1
          %s178 = scalar_lea.sflag [#allocation9], %s177
          %s179 = sand.u32 %s88, 1
          %s180 = smul.addr %s179, 256
          %s181 = scalar_lea.vmem [#allocation8], %s180
          %s183 = ssub.s32 4096, 4096
          %184 = vsyncadd %s178, %s183
          %s185 = smul.addr %s30, 64
          %s186 = smul.addr %s29, 256
          %s187 = sadd.s32 %s185, %s186
          %s188 = smul.addr %s187, 64
          %s189 = scalar_lea.hbm %s2, %s188
          %s190 = sshll.u32 %s181, 4
          %s191 = int_to_ptr.vmem [resolvable:$true] %s190
          %196 = dma.hbm_to_vmem [thread:$0]  %s189, 4096, %s191, %s178, 256, 256, 16
        $region24: #{tpu_custom_call.1} parent=15 // pred_fallthru
          _
      $region16: #{tpu_custom_call.1} parent=5 // pred_fallthru
        _
      %p197 = scmp.le.s32.totalorder 1, %s22
      %p198 = scmp.lt.s32.totalorder %s22, 17
      %p199 = pnand %p197, %p198
      %p200 = pneg %p199
      // Predicated region
      $region25: #{tpu_custom_call.1} parent=5 // pred_check
        _
      $region26: #{tpu_custom_call.1} parent=5 // pred_check_branch
        %202 = sbr.rel (%p199) target = $region28
      $region27: #{tpu_custom_call.1} parent=5 // pred_region
        %s203 = ssub.s32 %s22, 1
        %s204 = sand.u32 %s63, 1
        %s205 = scalar_lea.sflag [#allocation6], %s204
        %s206 = sand.u32 %s63, 1
        %s207 = scalar_lea.vmem [#allocation5], %s206
        // Predicated region
        $region29: #{tpu_custom_call.1} parent=27 // pred_check
          %p208 = pneg %p76
        $region30: #{tpu_custom_call.1} parent=27 // pred_check_branch
          %210 = sbr.rel (%p208) target = $region32
        $region31: #{tpu_custom_call.1} parent=27 // pred_region
          %211 = dma.done %s205, 16
        $region32: #{tpu_custom_call.1} parent=27 // pred_fallthru
          _
        %s212 = sand.u32 %s91, 1
        %s213 = scalar_lea.sflag [#allocation9], %s212
        %s214 = sand.u32 %s91, 1
        %s215 = smul.addr %s214, 256
        %s216 = scalar_lea.vmem [#allocation8], %s215
        // Predicated region
        $region33: #{tpu_custom_call.1} parent=27 // pred_check
          %p217 = pneg %p104
        $region34: #{tpu_custom_call.1} parent=27 // pred_check_branch
          %219 = sbr.rel (%p217) target = $region36
        $region35: #{tpu_custom_call.1} parent=27 // pred_region
          %220 = dma.done %s213, 4096
        $region36: #{tpu_custom_call.1} parent=27 // pred_fallthru
          _
        %s221 = sand.u32 %s63, 1
        %s222 = scalar_lea.sflag [#allocation6], %s221
        %s223 = sand.u32 %s63, 1
        %s224 = scalar_lea.vmem [#allocation5], %s223
        %p225 = pneg %p76
        %p226 = pneg %p73
        %s227 = sand.u32 %s91, 1
        %s228 = scalar_lea.sflag [#allocation9], %s227
        %s229 = sand.u32 %s91, 1
        %s230 = smul.addr %s229, 256
        %s231 = scalar_lea.vmem [#allocation8], %s230
        %p232 = pneg %p104
        %p233 = pneg %p101
        %p234 = pneg %p130
        %p235 = pneg %p127
        %s236 = sand.u32 %s117, 1
        %s237 = scalar_lea.sflag [#allocation7], %s236
        %s238 = sand.u32 %s117, 1
        %s239 = smul.addr %s238, 4
        %s240 = scalar_lea.vmem [#allocation10], %s239
        %s241 = sshra.s32 %s32, 7
        %s242 = sand.u32 %s32, 127
        %s243 = sadd.s32 %s241, %s31
        %s244 = smul.u32 %s243, 128
        %s245 = sshra.s32 %s32, 7
        %s246 = sand.u32 %s32, 127
        %s247 = sadd.s32 %s244, %s246
        %s248 = sld [smem:[#allocation4 + %s247]]
        %s249 = smul.u32 4, %s31
        %p251 = scmp.eq.s32.totalorder %s32, 0
        // Predicated region
        $region37: #{tpu_custom_call.1} parent=27 // pred_check
          %p252 = pneg %p251
        $region38: #{tpu_custom_call.1} parent=27 // pred_check_branch
          %254 = sbr.rel (%p252) target = $region40
        $region39: #{tpu_custom_call.1} parent=27 // pred_region
          %v255 = vlaneseq
          %vm256 = vcmp.ge.s32.totalorder %v255, 0
          %vm257 = vcmp.lt.s32.totalorder %v255, 512
          %vm258 = vmand %vm256, %vm257
          %259 = vst.msk [vmem:[#allocation2] sm:$0xf] %vm258, 0.0
        $region40: #{tpu_custom_call.1} parent=27 // pred_fallthru
          _
        %v260 = vld [vmem:[#allocation2] sm:$0xf]
        %v261 = vld [vmem:[%s207] sm:$0x1]
        %v262 = vld [vmem:[%s216] sm:$0xff]
        %v263 = vld [vmem:[%s216 + $0x8] sm:$0xff]
        %v264 = vld [vmem:[%s216 + $0x10] sm:$0xff]
        %v265 = vld [vmem:[%s216 + $0x18] sm:$0xff]
        %v266 = vld [vmem:[%s216 + $0x20] sm:$0xff]
        %v267 = vld [vmem:[%s216 + $0x28] sm:$0xff]
        %v268 = vld [vmem:[%s216 + $0x30] sm:$0xff]
        %v269 = vld [vmem:[%s216 + $0x38] sm:$0xff]
        %v270 = vld [vmem:[%s216 + $0x40] sm:$0xff]
        %v271 = vld [vmem:[%s216 + $0x48] sm:$0xff]
        %v272 = vld [vmem:[%s216 + $0x50] sm:$0xff]
        %v273 = vld [vmem:[%s216 + $0x58] sm:$0xff]
        %v274 = vld [vmem:[%s216 + $0x60] sm:$0xff]
        %v275 = vld [vmem:[%s216 + $0x68] sm:$0xff]
        %v276 = vld [vmem:[%s216 + $0x70] sm:$0xff]
        %v277 = vld [vmem:[%s216 + $0x78] sm:$0xff]
        %v278 = vld [vmem:[%s216 + $0x80] sm:$0xff]
        %v279 = vld [vmem:[%s216 + $0x88] sm:$0xff]
        %v280 = vld [vmem:[%s216 + $0x90] sm:$0xff]
        %v281 = vld [vmem:[%s216 + $0x98] sm:$0xff]
        %v282 = vld [vmem:[%s216 + $0xa0] sm:$0xff]
        %v283 = vld [vmem:[%s216 + $0xa8] sm:$0xff]
        %v284 = vld [vmem:[%s216 + $0xb0] sm:$0xff]
        %v285 = vld [vmem:[%s216 + $0xb8] sm:$0xff]
        %v286 = vld [vmem:[%s216 + $0xc0] sm:$0xff]
        %v287 = vld [vmem:[%s216 + $0xc8] sm:$0xff]
        %v288 = vld [vmem:[%s216 + $0xd0] sm:$0xff]
        %v289 = vld [vmem:[%s216 + $0xd8] sm:$0xff]
        %v290 = vld [vmem:[%s216 + $0xe0] sm:$0xff]
        %v291 = vld [vmem:[%s216 + $0xe8] sm:$0xff]
        %v292 = vld [vmem:[%s216 + $0xf0] sm:$0xff]
        %v293 = vld [vmem:[%s216 + $0xf8] sm:$0xff]
        %v326 = vunpack.c.l.b16 %v262
        %v327 = vunpack.c.h.b16 %v262
        %v328 = vunpack.c.l.b16 %v263
        %v329 = vunpack.c.h.b16 %v263
        %v330 = vunpack.c.l.b16 %v264
        %v331 = vunpack.c.h.b16 %v264
        %v332 = vunpack.c.l.b16 %v265
        %v333 = vunpack.c.h.b16 %v265
        %v334 = vunpack.c.l.b16 %v266
        %v335 = vunpack.c.h.b16 %v266
        %v336 = vunpack.c.l.b16 %v267
        %v337 = vunpack.c.h.b16 %v267
        %v338 = vunpack.c.l.b16 %v268
        %v339 = vunpack.c.h.b16 %v268
        %v340 = vunpack.c.l.b16 %v269
        %v341 = vunpack.c.h.b16 %v269
        %v342 = vunpack.c.l.b16 %v270
        %v343 = vunpack.c.h.b16 %v270
        %v344 = vunpack.c.l.b16 %v271
        %v345 = vunpack.c.h.b16 %v271
        %v346 = vunpack.c.l.b16 %v272
        %v347 = vunpack.c.h.b16 %v272
        %v348 = vunpack.c.l.b16 %v273
        %v349 = vunpack.c.h.b16 %v273
        %v350 = vunpack.c.l.b16 %v274
        %v351 = vunpack.c.h.b16 %v274
        %v352 = vunpack.c.l.b16 %v275
        %v353 = vunpack.c.h.b16 %v275
        %v354 = vunpack.c.l.b16 %v276
        %v355 = vunpack.c.h.b16 %v276
        %v356 = vunpack.c.l.b16 %v277
        %v357 = vunpack.c.h.b16 %v277
        %v358 = vunpack.c.l.b16 %v278
        %v359 = vunpack.c.h.b16 %v278
        %v360 = vunpack.c.l.b16 %v279
        %v361 = vunpack.c.h.b16 %v279
        %v362 = vunpack.c.l.b16 %v280
        %v363 = vunpack.c.h.b16 %v280
        %v364 = vunpack.c.l.b16 %v281
        %v365 = vunpack.c.h.b16 %v281
        %v366 = vunpack.c.l.b16 %v282
        %v367 = vunpack.c.h.b16 %v282
        %v368 = vunpack.c.l.b16 %v283
        %v369 = vunpack.c.h.b16 %v283
        %v370 = vunpack.c.l.b16 %v284
        %v371 = vunpack.c.h.b16 %v284
        %v372 = vunpack.c.l.b16 %v285
        %v373 = vunpack.c.h.b16 %v285
        %v374 = vunpack.c.l.b16 %v286
        %v375 = vunpack.c.h.b16 %v286
        %v376 = vunpack.c.l.b16 %v287
        %v377 = vunpack.c.h.b16 %v287
        %v378 = vunpack.c.l.b16 %v288
        %v379 = vunpack.c.h.b16 %v288
        %v380 = vunpack.c.l.b16 %v289
        %v381 = vunpack.c.h.b16 %v289
        %v382 = vunpack.c.l.b16 %v290
        %v383 = vunpack.c.h.b16 %v290
        %v384 = vunpack.c.l.b16 %v291
        %v385 = vunpack.c.h.b16 %v291
        %v386 = vunpack.c.l.b16 %v292
        %v387 = vunpack.c.h.b16 %v292
        %v388 = vunpack.c.l.b16 %v293
        %v389 = vunpack.c.h.b16 %v293
        %v390 = vpack.c.b16 %v330, %v326
        %v391 = vpack.c.b16 %v331, %v327
        %v392 = vpack.c.b16 %v332, %v328
        %v393 = vpack.c.b16 %v333, %v329
        %v394 = vpack.c.b16 %v338, %v334
        %v395 = vpack.c.b16 %v339, %v335
        %v396 = vpack.c.b16 %v340, %v336
        %v397 = vpack.c.b16 %v341, %v337
        %v398 = vpack.c.b16 %v346, %v342
        %v399 = vpack.c.b16 %v347, %v343
        %v400 = vpack.c.b16 %v348, %v344
        %v401 = vpack.c.b16 %v349, %v345
        %v402 = vpack.c.b16 %v354, %v350
        %v403 = vpack.c.b16 %v355, %v351
        %v404 = vpack.c.b16 %v356, %v352
        %v405 = vpack.c.b16 %v357, %v353
        %v406 = vpack.c.b16 %v362, %v358
        %v407 = vpack.c.b16 %v363, %v359
        %v408 = vpack.c.b16 %v364, %v360
        %v409 = vpack.c.b16 %v365, %v361
        %v410 = vpack.c.b16 %v370, %v366
        %v411 = vpack.c.b16 %v371, %v367
        %v412 = vpack.c.b16 %v372, %v368
        %v413 = vpack.c.b16 %v373, %v369
        %v414 = vpack.c.b16 %v378, %v374
        %v415 = vpack.c.b16 %v379, %v375
        %v416 = vpack.c.b16 %v380, %v376
        %v417 = vpack.c.b16 %v381, %v377
        %v418 = vpack.c.b16 %v386, %v382
        %v419 = vpack.c.b16 %v387, %v383
        %v420 = vpack.c.b16 %v388, %v384
        %v421 = vpack.c.b16 %v389, %v385
        %454 = vmatprep.subr.bf16.mxu0 %v391
        %455 = vmatpush1.bf16.msra.mxu0 %v390
        %456 = vmatprep.subr.bf16.mxu0 %v395
        %457 = vmatpush1.bf16.msra.mxu0 %v394
        %458 = vmatprep.subr.bf16.mxu0 %v399
        %459 = vmatpush1.bf16.msra.mxu0 %v398
        %460 = vmatprep.subr.bf16.mxu0 %v403
        %461 = vmatpush1.bf16.msra.mxu0 %v402
        %462 = vmatprep.subr.bf16.mxu0 %v407
        %463 = vmatpush1.bf16.msra.mxu0 %v406
        %464 = vmatprep.subr.bf16.mxu0 %v411
        %465 = vmatpush1.bf16.msra.mxu0 %v410
        %466 = vmatprep.subr.bf16.mxu0 %v415
        %467 = vmatpush1.bf16.msra.mxu0 %v414
        %468 = vmatprep.subr.bf16.mxu0 %v419
        %469 = vmatpush1.bf16.msra.mxu0 %v418
        %470 = vmatprep.subr.bf16.mxu0 0
        %471 = vmatpush1.bf16.msra.mxu0 0
        %472 = vmatprep.subr.bf16.mxu0 0
        %473 = vmatpush1.bf16.msra.mxu0 0
        %474 = vmatprep.subr.bf16.mxu0 0
        %475 = vmatpush1.bf16.msra.mxu0 0
        %476 = vmatprep.subr.bf16.mxu0 0
        %477 = vmatpush1.bf16.msra.mxu0 0
        %478 = vmatprep.subr.bf16.mxu0 0
        %479 = vmatpush1.bf16.msra.mxu0 0
        %480 = vmatprep.subr.bf16.mxu0 0
        %481 = vmatpush1.bf16.msra.mxu0 0
        %482 = vmatprep.subr.bf16.mxu0 0
        %483 = vmatpush1.bf16.msra.mxu0 0
        %484 = vmatprep.subr.bf16.mxu0 0
        %485 = vmatpush1.bf16.msra.mxu0 0
        %486 = vmatprep.mubr.bf16.mxu0 0
        %487 = vmatmul.mubr.bf16.gmra.mrb[0].mxu0 %v261
        %v488 = vpop.f32.mrb[0].mxu0
        %v489 = vadd.f32 0.0, %v488
        %v490 = vpop.f32.mrb[0].mxu0
        %v491 = vadd.f32 0.0, %v490
        %v492 = vpop.f32.mrb[0].mxu0
        %v493 = vpop.f32.mrb[0].mxu0
        %494 = vdwg.mxu0
        %495 = vmatprep.subr.bf16.mxu0 %v393
        %496 = vmatpush1.bf16.msra.mxu0 %v392
        %497 = vmatprep.subr.bf16.mxu0 %v397
        %498 = vmatpush1.bf16.msra.mxu0 %v396
        %499 = vmatprep.subr.bf16.mxu0 %v401
        %500 = vmatpush1.bf16.msra.mxu0 %v400
        %501 = vmatprep.subr.bf16.mxu0 %v405
        %502 = vmatpush1.bf16.msra.mxu0 %v404
        %503 = vmatprep.subr.bf16.mxu0 %v409
        %504 = vmatpush1.bf16.msra.mxu0 %v408
        %505 = vmatprep.subr.bf16.mxu0 %v413
        %506 = vmatpush1.bf16.msra.mxu0 %v412
        %507 = vmatprep.subr.bf16.mxu0 %v417
        %508 = vmatpush1.bf16.msra.mxu0 %v416
        %509 = vmatprep.subr.bf16.mxu0 %v421
        %510 = vmatpush1.bf16.msra.mxu0 %v420
        %511 = vmatprep.subr.bf16.mxu0 0
        %512 = vmatpush1.bf16.msra.mxu0 0
        %513 = vmatprep.subr.bf16.mxu0 0
        %514 = vmatpush1.bf16.msra.mxu0 0
        %515 = vmatprep.subr.bf16.mxu0 0
        %516 = vmatpush1.bf16.msra.mxu0 0
        %517 = vmatprep.subr.bf16.mxu0 0
        %518 = vmatpush1.bf16.msra.mxu0 0
        %519 = vmatprep.subr.bf16.mxu0 0
        %520 = vmatpush1.bf16.msra.mxu0 0
        %521 = vmatprep.subr.bf16.mxu0 0
        %522 = vmatpush1.bf16.msra.mxu0 0
        %523 = vmatprep.subr.bf16.mxu0 0
        %524 = vmatpush1.bf16.msra.mxu0 0
        %525 = vmatprep.subr.bf16.mxu0 0
        %526 = vmatpush1.bf16.msra.mxu0 0
        %527 = vmatprep.mubr.bf16.mxu0 0
        %528 = vmatmul.mubr.bf16.gmra.mrb[0].mxu0 %v261
        %v529 = vpop.f32.mrb[0].mxu0
        %v530 = vadd.f32 0.0, %v529
        %v531 = vpop.f32.mrb[0].mxu0
        %v532 = vadd.f32 0.0, %v531
        %v533 = vpop.f32.mrb[0].mxu0
        %v534 = vpop.f32.mrb[0].mxu0
        %535 = vdwg.mxu0
        %v540 = vcombine.low %v489, %v491
        %v541 = vcombine.low %v530, %v532
        %v543 = vunpack.c.l.s4 1966171168
        %v544 = vunpack.c.0.s8 %v543
        %v545 = vlaneseq
        %v546 = vshrl.u32 %v545, 7
        %v547 = vsub.s32 %v544, %v546
        %v548 = vrot.slane %v540, %v547
        %v550 = vunpack.c.l.s4 1966171168
        %v551 = vunpack.c.0.s8 %v550
        %v552 = vlaneseq
        %v553 = vshrl.u32 %v552, 7
        %v554 = vsub.s32 %v551, %v553
        %v555 = vrot.slane %v541, %v554
        %v556 = vcombine.low %v548, %v555
        %v558 = vunpack.c.l.s4 1966171168
        %v559 = vunpack.c.0.s8 %v558
        %v560 = vlaneseq
        %v561 = vshrl.u32 %v560, 7
        %v562 = vsub.s32 %v559, %v561
        %v563 = vrot.slane %v556, %v562
        %v565 = vadd.f32 %v260, %v563
        %v566 = vlaneseq
        %vm567 = vcmp.ge.s32.totalorder %v566, 0
        %vm568 = vcmp.lt.s32.totalorder %v566, 512
        %vm569 = vmand %vm567, %vm568
        %570 = vst.msk [vmem:[#allocation2] sm:$0xf] %vm569, %v565
        %p571 = scmp.eq.s32.totalorder %s32, 3
        // Predicated region
        $region41: #{tpu_custom_call.1} parent=27 // pred_check
          %p572 = pneg %p571
        $region42: #{tpu_custom_call.1} parent=27 // pred_check_branch
          %574 = sbr.rel (%p572) target = $region44
        $region43: #{tpu_custom_call.1} parent=27 // pred_region
          %v575 = vld [vmem:[#allocation2] sm:$0xf]
          %576 = vst.msk [vmem:[%s240] sm:$0xf] %vm569, %v575
        $region44: #{tpu_custom_call.1} parent=27 // pred_fallthru
          _
        %s577 = sand.u32 %s117, 1
        %s578 = scalar_lea.sflag [#allocation7], %s577
        %s579 = sand.u32 %s117, 1
        %s580 = smul.addr %s579, 4
        %s581 = scalar_lea.vmem [#allocation10], %s580
        // Predicated region
        $region45: #{tpu_custom_call.1} parent=27 // pred_check
          %p582 = pneg %p127
        $region46: #{tpu_custom_call.1} parent=27 // pred_check_branch
          %584 = sbr.rel (%p582) target = $region48
        $region47: #{tpu_custom_call.1} parent=27 // pred_region
          %s585 = smul.u32 4, %s31
          %s587 = ssub.s32 64, 64
          %588 = vsyncadd %s578, %s587
          %s589 = smul.addr %s585, 16
          %s590 = scalar_lea.hbm %s3, %s589
          %s592 = sshll.u32 %s581, 4
          %s593 = int_to_ptr.vmem [resolvable:$true] %s592
          %595 = dma.vmem_to_hbm [thread:$0]  %s593, 64, %s590, %s578
        $region48: #{tpu_custom_call.1} parent=27 // pred_fallthru
          _
      $region28: #{tpu_custom_call.1} parent=5 // pred_fallthru
        _
      %p596 = scmp.le.s32.totalorder 2, %s22
      // Predicated region
      $region49: #{tpu_custom_call.1} parent=5 // pred_check
        %p597 = pneg %p596
      $region50: #{tpu_custom_call.1} parent=5 // pred_check_branch
        %599 = sbr.rel (%p597) target = $region52
      $region51: #{tpu_custom_call.1} parent=5 // pred_region
        %s600 = ssub.s32 %s22, 2
        // Predicated region
        $region53: #{tpu_custom_call.1} parent=51 // pred_check
          %p601 = pneg %p133
        $region54: #{tpu_custom_call.1} parent=51 // pred_check_branch
          %603 = sbr.rel (%p601) target = $region56
        $region55: #{tpu_custom_call.1} parent=51 // pred_region
          %s604 = sand.u32 %s118, 1
          %s605 = scalar_lea.sflag [#allocation7], %s604
          %s606 = sand.u32 %s118, 1
          %s607 = smul.addr %s606, 4
          %s608 = scalar_lea.vmem [#allocation10], %s607
          %609 = dma.done %s605, 64
        $region56: #{tpu_custom_call.1} parent=51 // pred_fallthru
          _
      $region52: #{tpu_custom_call.1} parent=5 // pred_fallthru
        _
    $region6: #{tpu_custom_call.1} parent=1 // loop_footer
      %s26 = sadd.s32 1, %s22
    $region7: #{tpu_custom_call.1} parent=1 // loop_footer_branch
      %21 = sbr.rel target = $region3
    $region8: #{tpu_custom_call.1} parent=1 // loop_exit
      _
    %610 = vsyncpa [#allocation6], 1
    %s611 = scalar_lea.sflag [#allocation6], 1
    %612 = vsyncpa %s611, 1
    %613 = vsyncpa [#allocation9], 1
    %s614 = scalar_lea.sflag [#allocation9], 1
    %615 = vsyncpa %s614, 1
    %616 = vsyncpa [#allocation7], 1
    %s617 = scalar_lea.sflag [#allocation7], 1
    %618 = vsyncpa %s617, 1

</llo_original>
